<compile_context>
chip_gen: v7x
topology: tpu7x:2x2x1
jax: 0.10.0
libtpu: 0.0.40
codegen_flags: <defaults>
</compile_context>

<pallas_src>
import jax
import jax.numpy as jnp
from jax import lax
from jax.experimental import pallas as pl
from jax.experimental.pallas import tpu as pltpu


def _round_up(x, m):
    return (x + m - 1) // m * m


def _cdiv(a, b):
    return -(-a // b)


def _maybe_pad(a, shape):
    """Zero-pad `a` up to `shape` only if needed (avoid per-call HBM copies)."""
    pads = [(0, s - d) for d, s in zip(a.shape, shape)]
    if any(p[1] for p in pads):
        return jnp.pad(a, pads)
    return a


def _lora_linear_kernel(x_ref, w_ref, b_ref, mid_ref, wb_ref, o_ref, acc_ref):
    """Grid = (M tiles, N tiles, K tiles); K is the reduction axis (last, 'arbitrary').

    x_ref  : (tm, tk)   activations (cast to compute dtype in-kernel)
    w_ref  : (tn, tk)   W_lin block in native (out, in) layout (no wrapper transpose)
    b_ref  : (1, tn)    bias (f32)
    mid_ref: (tm, r_pad) precomputed x @ W_a (compute dtype)
    wb_ref : (r_pad, tn) (alpha/rank)-scaled W_b block (compute dtype)
    """
    k = pl.program_id(2)
    nk = pl.num_programs(2)

    x = x_ref[...].astype(w_ref.dtype)
    part = lax.dot_general(x, w_ref[...],
                           dimension_numbers=(((1,), (1,)), ((), ())),
                           preferred_element_type=jnp.float32)          # (tm, tn)

    @pl.when(k == 0)
    def _():
        acc_ref[...] = part                 # write first partial (no zero-fill + RMW)

    @pl.when(k > 0)
    def _():
        acc_ref[...] += part

    @pl.when(k == nk - 1)
    def _():
        lora = jnp.dot(mid_ref[...], wb_ref[...],
                       preferred_element_type=jnp.float32)              # (tm, tn)
        o_ref[...] = (acc_ref[...] + b_ref[...] + lora).astype(o_ref.dtype)


def _plain_linear_kernel(x_ref, w_ref, b_ref, o_ref, acc_ref):
    k = pl.program_id(2)
    nk = pl.num_programs(2)

    x = x_ref[...].astype(w_ref.dtype)
    part = lax.dot_general(x, w_ref[...],
                           dimension_numbers=(((1,), (1,)), ((), ())),
                           preferred_element_type=jnp.float32)

    @pl.when(k == 0)
    def _():
        acc_ref[...] = part

    @pl.when(k > 0)
    def _():
        acc_ref[...] += part

    @pl.when(k == nk - 1)
    def _():
        o_ref[...] = (acc_ref[...] + b_ref[...]).astype(o_ref.dtype)


def linear_with_lora(x, w_lin, b_lin, w_a=None, w_b=None, *, rank=0, alpha=1,
                     tm=256, tn=512, tk=1024, compute_dtype=None,
                     vmem_limit_bytes=48 * 1024 * 1024):
    """x: [..., in]; w_lin: [out, in] (PyTorch layout); b_lin: [out];
    w_a: [in, rank]; w_b: [rank, out].  Returns [..., out].

    compute_dtype defaults to bfloat16 (MXU operands); accumulation is always f32.
    Pass compute_dtype=jnp.float32 for full-f32 numerics."""
    orig_shape = x.shape
    in_dim = orig_shape[-1]
    out_dim = w_lin.shape[0]
    x2 = x.reshape(-1, in_dim)
    M = x2.shape[0]

    out_dtype = x.dtype
    if compute_dtype is None:
        compute_dtype = jnp.bfloat16   # bf16 MXU operands; f32 accumulation in the kernel

    # Tile selection: clamp to the (padded) problem size, keep (8, 128) alignment.
    tm = min(tm, _round_up(M, 8))
    tk = min(tk, _round_up(in_dim, 128))
    tn = min(tn, _round_up(out_dim, 128))

    M_pad = _round_up(M, tm)
    K_pad = _round_up(in_dim, tk)
    N_pad = _round_up(out_dim, tn)

    # Megacore (v7x): guarantee >=2 blocks along a 'parallel' axis when the problem allows,
    # otherwise one of the two TensorCores sits idle.
    if M_pad // tm == 1 and N_pad // tn == 1:
        if out_dim > 128 and tn > 128:
            tn = _round_up(_cdiv(tn, 2), 128)
            N_pad = _round_up(out_dim, tn)
        elif M > 8 and tm > 8:
            tm = _round_up(_cdiv(tm, 2), 8)
            M_pad = _round_up(M, tm)

    # Activations: pad only if required; the compute-dtype cast happens INSIDE the kernel
    # (VPU cast on the VMEM tile) so there is no extra HBM pass over x.
    xp = _maybe_pad(x2, (M_pad, K_pad))

    # Weights: cast once to compute dtype (halves weight HBM traffic for bf16) and pad only
    # if required.  Kept in native (out, in) layout -- no transpose copy.
    # TODO(synk): in a full model, hoist the weight cast/pad out of the per-call hot path.
    wp = _maybe_pad(w_lin.astype(compute_dtype), (N_pad, K_pad))
    bp = _maybe_pad(b_lin.reshape(1, out_dim).astype(jnp.float32), (1, N_pad))

    grid = (M_pad // tm, N_pad // tn, K_pad // tk)
    x_spec = pl.BlockSpec((tm, tk), lambda i, j, k: (i, k))
    w_spec = pl.BlockSpec((tn, tk), lambda i, j, k: (j, k))     # (out, in) layout
    b_spec = pl.BlockSpec((1, tn), lambda i, j, k: (0, j))
    o_spec = pl.BlockSpec((tm, tn), lambda i, j, k: (i, j))
    cparams = pltpu.CompilerParams(
        dimension_semantics=("parallel", "parallel", "arbitrary"),
        vmem_limit_bytes=int(vmem_limit_bytes))

    itemsize = jnp.dtype(compute_dtype).itemsize
    out_itemsize = jnp.dtype(out_dtype).itemsize
    base_flops = 2 * M_pad * K_pad * N_pad
    base_bytes = (xp.size * xp.dtype.itemsize + wp.size * itemsize
                  + bp.size * 4 + M_pad * N_pad * out_itemsize)

    if rank > 0:
        assert w_a is not None and w_b is not None
        scaling = float(alpha) / float(rank)
        r_pad = _round_up(rank, 128)

        # mid = x @ W_a is tiny (M x rank): compute it ONCE as a plain XLA matmul instead of
        # re-doing it inside the kernel for every N tile (saves ~33% of MXU work + W_a DMA).
        mid = jnp.dot(x2.astype(compute_dtype), w_a.astype(compute_dtype),
                      preferred_element_type=jnp.float32)
        midp = _maybe_pad(mid, (M_pad, r_pad)).astype(compute_dtype)
        # Fold (alpha/rank) into W_b so the kernel does no extra VPU multiply.
        wbp = _maybe_pad((scaling * w_b).astype(compute_dtype), (r_pad, N_pad))

        cost = pl.CostEstimate(
            flops=int(base_flops + 2 * M * in_dim * rank + 2 * M_pad * r_pad * N_pad),
            transcendentals=0,
            bytes_accessed=int(base_bytes + midp.size * itemsize + wbp.size * itemsize))

        out = pl.pallas_call(
            _lora_linear_kernel,
            out_shape=jax.ShapeDtypeStruct((M_pad, N_pad), out_dtype),
            grid_spec=pltpu.PrefetchScalarGridSpec(
                num_scalar_prefetch=0,
                grid=grid,
                in_specs=[
                    x_spec, w_spec, b_spec,
                    pl.BlockSpec((tm, r_pad), lambda i, j, k: (i, 0)),   # precomputed mid
                    pl.BlockSpec((r_pad, tn), lambda i, j, k: (0, j)),   # scaled W_b
                ],
                out_specs=o_spec,
                scratch_shapes=[pltpu.VMEM((tm, tn), jnp.float32)]),      # f32 accumulator
            compiler_params=cparams,
            cost_estimate=cost,
        )(xp, wp, bp, midp, wbp)
    else:
        # rank == 0: the module forward is just the plain linear layer (static branch).
        cost = pl.CostEstimate(flops=int(base_flops), transcendentals=0,
                               bytes_accessed=int(base_bytes))
        out = pl.pallas_call(
            _plain_linear_kernel,
            out_shape=jax.ShapeDtypeStruct((M_pad, N_pad), out_dtype),
            grid_spec=pltpu.PrefetchScalarGridSpec(
                num_scalar_prefetch=0,
                grid=grid,
                in_specs=[x_spec, w_spec, b_spec],
                out_specs=o_spec,
                scratch_shapes=[pltpu.VMEM((tm, tn), jnp.float32)]),
            compiler_params=cparams,
            cost_estimate=cost,
        )(xp, wp, bp)

    out = out[:M, :out_dim]
    return out.reshape(*orig_shape[:-1], out_dim)


if __name__ == "__main__":
    # Small, module-consistent shapes: batch=2, seq=8, in_features=32,
    # out_features=32, rank=8, alpha=16 -> scaling=2.0, dropout=0.0 (identity).
    batch, seq = 2, 8
    in_dim, out_dim = 32, 32
    rank, alpha = 8, 16

    key = jax.random.PRNGKey(0)
    k_x, k_w, k_b, k_a, k_bb = jax.random.split(key, 5)

    x = jax.random.normal(k_x, (batch, seq, in_dim), jnp.float32)
    w_lin = jax.random.normal(k_w, (out_dim, in_dim), jnp.float32) * 0.05  # nn.Linear [out, in]
    b_lin = jax.random.normal(k_b, (out_dim,), jnp.float32) * 0.05
    std = 1.0 / jnp.sqrt(jnp.float32(rank))
    w_a = jax.random.normal(k_a, (in_dim, rank), jnp.float32) * std
    # NOTE: PyTorch __init__ sets W_b = zeros; use small random values so the LoRA
    # path is numerically exercised (forward semantics unchanged).
    w_b = jax.random.normal(k_bb, (rank, out_dim), jnp.float32) * 0.05

    scaling = alpha / rank
    ref = x @ w_lin.T + b_lin + scaling * ((x @ w_a) @ w_b)
    ref0 = x @ w_lin.T + b_lin

    # --- rank > 0, f32 operands (tight tolerance vs. PyTorch-equivalent f32 reference) ---
    out_f32 = linear_with_lora(x, w_lin, b_lin, w_a, w_b, rank=rank, alpha=alpha,
                               compute_dtype=jnp.float32)
    out_f32 = jax.block_until_ready(out_f32)
    assert out_f32.shape == ref.shape
    assert jnp.allclose(out_f32, ref, atol=1e-4, rtol=1e-4), \
        float(jnp.max(jnp.abs(out_f32 - ref)))

    # --- rank > 0, default bf16 MXU operands with f32 accumulation (loose tolerance) ---
    out_bf16 = linear_with_lora(x, w_lin, b_lin, w_a, w_b, rank=rank, alpha=alpha)
    out_bf16 = jax.block_until_ready(out_bf16)
    assert jnp.allclose(out_bf16, ref, atol=5e-2, rtol=5e-2), \
        float(jnp.max(jnp.abs(out_bf16 - ref)))

    # --- rank == 0 path (plain linear) ---
    out0 = linear_with_lora(x, w_lin, b_lin, rank=0, alpha=1, compute_dtype=jnp.float32)
    out0 = jax.block_until_ready(out0)
    assert jnp.allclose(out0, ref0, atol=1e-4, rtol=1e-4), \
        float(jnp.max(jnp.abs(out0 - ref0)))

    print("KERNEL_OK")
</pallas_src>

<mosaic_0001>
module attributes {stable_mosaic.version = 11 : i64} {
  func.func @_lora_linear_kernel(%arg0: i32, %arg1: i32, %arg2: i32, %arg3: memref<8x128xf32, #tpu.memory_space<vmem>>, %arg4: memref<128x128xf32, #tpu.memory_space<vmem>>, %arg5: memref<1x128xf32, #tpu.memory_space<vmem>>, %arg6: memref<8x128xf32, #tpu.memory_space<vmem>>, %arg7: memref<128x128xf32, #tpu.memory_space<vmem>>, %arg8: memref<8x128xf32, #tpu.memory_space<vmem>>, %arg9: memref<8x128xf32, #tpu.memory_space<vmem>>) attributes {dimension_semantics = [#tpu.dimension_semantics<parallel>, #tpu.dimension_semantics<parallel>, #tpu.dimension_semantics<arbitrary>], iteration_bounds = array<i64: 2, 1, 1>, scalar_prefetch = 0 : i64, scratch_operands = 1 : i64, tpu.core_type = #tpu.core_type<tc>, window_params = [{transform_indices = @transform_0, window_bounds = array<i64: 8, 128>}, {transform_indices = @transform_1, window_bounds = array<i64: 128, 128>}, {transform_indices = @transform_2, window_bounds = array<i64: 1, 128>}, {transform_indices = @transform_3, window_bounds = array<i64: 8, 128>}, {transform_indices = @transform_4, window_bounds = array<i64: 128, 128>}, {transform_indices = @transform_5, window_bounds = array<i64: 8, 128>}]} {
    %c0 = arith.constant 0 : index
    %c0_0 = arith.constant 0 : index
    %0 = vector.load %arg3[%c0, %c0_0] : memref<8x128xf32, #tpu.memory_space<vmem>>, vector<8x128xf32>
    %c0_1 = arith.constant 0 : index
    %c0_2 = arith.constant 0 : index
    %1 = vector.load %arg4[%c0_1, %c0_2] : memref<128x128xf32, #tpu.memory_space<vmem>>, vector<128x128xf32>
    %cst = arith.constant dense<0.000000e+00> : vector<8x128xf32>
    %2 = tpu.matmul %0, %1, %cst {dimension_numbers = #tpu.dot_dimension_numbers<[1], [1], [0], [0], [0, 0, 1, 0], [], []>} : vector<8x128xf32>, vector<128x128xf32>, vector<8x128xf32> -> vector<8x128xf32>
    %c0_i32 = arith.constant 0 : i32
    %3 = arith.cmpi eq, %arg2, %c0_i32 : i32
    %4 = arith.extui %3 : i1 to i32
    %c0_i32_3 = arith.constant 0 : i32
    %5 = arith.cmpi ne, %4, %c0_i32_3 : i32
    scf.if %5 {
      %c0_8 = arith.constant 0 : index
      %c0_9 = arith.constant 0 : index
      %12 = vector.load %arg9[%c0_8, %c0_9] : memref<8x128xf32, #tpu.memory_space<vmem>>, vector<8x128xf32>
      tpu.vector_store %arg9[%c0_8, %c0_9], %2 {strides = array<i32>} : memref<8x128xf32, #tpu.memory_space<vmem>>, vector<8x128xf32>,
    } else {
    }
    %c0_i32_4 = arith.constant 0 : i32
    %6 = arith.cmpi sgt, %arg2, %c0_i32_4 : i32
    %7 = arith.extui %6 : i1 to i32
    %c0_i32_5 = arith.constant 0 : i32
    %8 = arith.cmpi ne, %7, %c0_i32_5 : i32
    scf.if %8 {
      %c0_8 = arith.constant 0 : index
      %c0_9 = arith.constant 0 : index
      %12 = vector.load %arg9[%c0_8, %c0_9] : memref<8x128xf32, #tpu.memory_space<vmem>>, vector<8x128xf32>
      %13 = arith.addf %12, %2 : vector<8x128xf32>
      %c0_10 = arith.constant 0 : index
      %c0_11 = arith.constant 0 : index
      %14 = vector.load %arg9[%c0_10, %c0_11] : memref<8x128xf32, #tpu.memory_space<vmem>>, vector<8x128xf32>
      tpu.vector_store %arg9[%c0_10, %c0_11], %13 {strides = array<i32>} : memref<8x128xf32, #tpu.memory_space<vmem>>, vector<8x128xf32>,
    } else {
    }
    %c0_i32_6 = arith.constant 0 : i32
    %9 = arith.cmpi eq, %arg2, %c0_i32_6 : i32
    %10 = arith.extui %9 : i1 to i32
    %c0_i32_7 = arith.constant 0 : i32
    %11 = arith.cmpi ne, %10, %c0_i32_7 : i32
    scf.if %11 {
      %c0_8 = arith.constant 0 : index
      %c0_9 = arith.constant 0 : index
      %12 = vector.load %arg6[%c0_8, %c0_9] : memref<8x128xf32, #tpu.memory_space<vmem>>, vector<8x128xf32>
      %c0_10 = arith.constant 0 : index
      %c0_11 = arith.constant 0 : index
      %13 = vector.load %arg7[%c0_10, %c0_11] : memref<128x128xf32, #tpu.memory_space<vmem>>, vector<128x128xf32>
      %cst_12 = arith.constant dense<0.000000e+00> : vector<8x128xf32>
      %14 = tpu.matmul %12, %13, %cst_12 {dimension_numbers = #tpu.dot_dimension_numbers<[1], [0], [0], [1], [0, 0, 1, 1], [], []>} : vector<8x128xf32>, vector<128x128xf32>, vector<8x128xf32> -> vector<8x128xf32>
      %c0_13 = arith.constant 0 : index
      %c0_14 = arith.constant 0 : index
      %15 = vector.load %arg9[%c0_13, %c0_14] : memref<8x128xf32, #tpu.memory_space<vmem>>, vector<8x128xf32>
      %c0_15 = arith.constant 0 : index
      %c0_16 = arith.constant 0 : index
      %16 = vector.load %arg5[%c0_15, %c0_16] : memref<1x128xf32, #tpu.memory_space<vmem>>, vector<1x128xf32>
      %17 = vector.broadcast %16 : vector<1x128xf32> to vector<8x128xf32>
      %18 = arith.addf %15, %17 : vector<8x128xf32>
      %19 = arith.addf %18, %14 : vector<8x128xf32>
      %c0_17 = arith.constant 0 : index
      %c0_18 = arith.constant 0 : index
      %20 = vector.load %arg8[%c0_17, %c0_18] : memref<8x128xf32, #tpu.memory_space<vmem>>, vector<8x128xf32>
      tpu.vector_store %arg8[%c0_17, %c0_18], %19 {strides = array<i32>} : memref<8x128xf32, #tpu.memory_space<vmem>>, vector<8x128xf32>,
    } else {
    }
    return
  }
  func.func @transform_0(%arg0: i32, %arg1: i32, %arg2: i32) -> (i32, i32) {
    %c0_i32 = arith.constant 0 : i32
    return %arg0, %arg2 : i32, i32
  }
  func.func @transform_1(%arg0: i32, %arg1: i32, %arg2: i32) -> (i32, i32) {
    %c0_i32 = arith.constant 0 : i32
    return %arg1, %arg2 : i32, i32
  }
  func.func @transform_2(%arg0: i32, %arg1: i32, %arg2: i32) -> (i32, i32) {
    %c0_i32 = arith.constant 0 : i32
    %c0_i32_0 = arith.constant 0 : i32
    return %c0_i32, %arg1 : i32, i32
  }
  func.func @transform_3(%arg0: i32, %arg1: i32, %arg2: i32) -> (i32, i32) {
    %c0_i32 = arith.constant 0 : i32
    %c0_i32_0 = arith.constant 0 : i32
    return %arg0, %c0_i32 : i32, i32
  }
  func.func @transform_4(%arg0: i32, %arg1: i32, %arg2: i32) -> (i32, i32) {
    %c0_i32 = arith.constant 0 : i32
    %c0_i32_0 = arith.constant 0 : i32
    return %c0_i32, %arg1 : i32, i32
  }
  func.func @transform_5(%arg0: i32, %arg1: i32, %arg2: i32) -> (i32, i32) {
    %c0_i32 = arith.constant 0 : i32
    return %arg0, %arg1 : i32, i32
  }
}

</mosaic_0001>

<llo_original>
// kernel: tpu_custom_call.1
$region0: #{tpu_custom_call.1}
  #allocation0 [shape = 'u32[]', space=smem, size = 0x4, offset = 0x4, fixed_abs, tag = 'smem constant byte address 0x4 - core index']
  #allocation1 [shape = 'u32[144,128]{1,0:T(1,128)}', space=vmem, size = 0x12000, scoped, tag = 'internal scratch']
  #allocation2 [shape = 'f32[8,128]{1,0:T(8,128)}', space=vmem, size = 0x1000, scoped, tag = 'scratch operand']
  %s0 = inlined_call_operand.hbm [shape: f32[16,128], index: 0, kind: input, shape index: {}]
  %s1 = inlined_call_operand.hbm [shape: f32[128,128], index: 1, kind: input, shape index: {}]
  %s2 = inlined_call_operand.vmem [shape: f32[1,128], index: 2, kind: input, shape index: {}]
  %s3 = inlined_call_operand.hbm [shape: f32[16,128], index: 3, kind: input, shape index: {}]
  %s4 = inlined_call_operand.hbm [shape: f32[128,128], index: 4, kind: input, shape index: {}]
  %s5 = inlined_call_operand.hbm [shape: f32[16,128], index: 5, kind: output, shape index: {}]
  %s6 = sld [smem:[#allocation0]]
  $region81: #{tpu_custom_call.1} parent=0
    _
  %s8 = ssub.s32 1, %s6
  %s9 = scalar_select 0, %s8, %s6
  $region1: #{tpu_custom_call.1} parent=0
    #allocation3 [shape = 'u8[8192]{0}', space=vmem, size = 0x2000, scoped, tag = 'input window, operand 0']
    #allocation4 [shape = 's32[2]{0}', space=sflag, size = 0x8, scoped, tag = 'scoped memory for tpu_custom_call.1']
    #allocation5 [shape = 's32[2]{0}', space=sflag, size = 0x8, scoped, tag = 'scoped memory for tpu_custom_call.1']
    #allocation6 [shape = 'u8[65536]{0}', space=vmem, size = 0x10000, scoped, tag = 'input window, operand 1, single buffered']
    #allocation7 [shape = 's32[1]{0}', space=sflag, size = 0x4, scoped, tag = 'scoped memory for tpu_custom_call.1']
    #allocation8 [shape = 'u8[8192]{0}', space=vmem, size = 0x2000, scoped, tag = 'input window, operand 3']
    #allocation9 [shape = 'u8[65536]{0}', space=vmem, size = 0x10000, scoped, tag = 'input window, operand 4, single buffered']
    #allocation10 [shape = 'u8[8192]{0}', space=vmem, size = 0x2000, scoped, tag = 'output window, operand 0']
    %10 = vsyncpa [#allocation4], 0
    %s11 = scalar_lea.sflag [#allocation4], 1
    %12 = vsyncpa %s11, 0
    %13 = vsyncpa [#allocation7], 0
    %14 = vsyncpa [#allocation5], 0
    %s15 = scalar_lea.sflag [#allocation5], 1
    %16 = vsyncpa %s15, 0
    loop: start=0, step=1, limit=4
    $region2: #{tpu_custom_call.1} parent=1 // loop_pre_header
      _
    $region3: #{tpu_custom_call.1} parent=1 // loop_header
      %s18 = sphi 0, %s22
      %p19 = scmp.ge.s32.totalorder %s18, 4
      %s25 = sphi 0, %s44
      %s26 = sphi 0, %s40
      %s27 = sphi 0, %s36
      %s28 = sphi 0, %s25
      %s29 = sphi 0, %s26
      %s30 = sphi 0, %s27
      %s31 = sphi 0, %s28
      %s32 = sphi 0, %s29
      %s33 = sphi 0, %s30
      %s49 = sphi 0, %s51
      %s52 = sphi 0, %s49
      %s53 = sphi 0, %s52
      %s69 = sphi 0, %s53
      %s77 = sphi 0, %s79
      %s80 = sphi 0, %s77
      %s81 = sphi 0, %s80
      %s97 = sphi 0, %s81
      %s103 = sphi 0, %s105
      %s106 = sphi 0, %s103
      %s107 = sphi 0, %s106
      %s123 = sphi 0, %s107
      %s129 = sphi 0, %s131
      %s132 = sphi 0, %s129
      %s133 = sphi 0, %s132
      %s149 = sphi 0, %s133
      %s155 = sphi 0, %s157
      %s158 = sphi 0, %s155
      %s159 = sphi 0, %s158
      %s175 = sphi 0, %s159
      %s183 = sphi 0, %s185
      %s186 = sphi 0, %s183
      %s187 = sphi 0, %s186
      %s203 = sphi 0, %s187
    $region4: #{tpu_custom_call.1} parent=1 // loop_header_branch
      %21 = sbr.rel (%p19) target = $region8
    $region5: #{tpu_custom_call.1} parent=1 // loop_body
      %s23 = ssub.s32 %s18, 1
      %s24 = ssub.s32 %s18, 2
      %s34 = sadd.s32 1, %s27
      %p35 = scmp.ge.s32.totalorder %s34, 1
      %s36 = scalar_select %p35, 0, %s34
      %s37 = sadd.s32 1, %s26
      %s38 = scalar_select %p35, %s37, %s26
      %p39 = scmp.ge.s32.totalorder %s38, 1
      %s40 = scalar_select %p39, 0, %s38
      %s41 = sadd.s32 1, %s25
      %s42 = scalar_select %p39, %s41, %s25
      %p43 = scmp.ge.s32.totalorder %s42, 2
      %s44 = scalar_select %p43, 0, %s42
      %s45 = ssub.s32 %s25, %s44
      %s46 = ssub.s32 %s27, %s36
      %s47 = sor.u32 %s45, %s46
      %p48 = scmp.eq.s32.totalorder %s47, 0
      %s50 = sadd.s32 %s49, 1
      %s51 = scalar_select %p48, %s49, %s50
      %p54 = pneg %p48
      %p55 = scmp.eq.s32.totalorder %s18, 1
      %p56 = por %p54, %p55
      %p57 = scmp.ne.s32.totalorder %s49, %s52
      %p58 = scmp.eq.s32.totalorder %s18, 0
      %p59 = por %p57, %p58
      %p60 = scmp.ne.s32.totalorder %s49, %s52
      %p61 = scmp.eq.s32.totalorder %s23, 1
      %p62 = por %p60, %p61
      %p63 = scmp.ne.s32.totalorder %s52, %s53
      %p64 = scmp.eq.s32.totalorder %s23, 0
      %p65 = por %p63, %p64
      %p66 = scmp.ne.s32.totalorder %s52, %s53
      %p67 = scmp.eq.s32.totalorder %s24, 1
      %p68 = por %p66, %p67
      %p70 = scmp.ne.s32.totalorder %s53, %s69
      %p71 = scmp.eq.s32.totalorder %s24, 0
      %p72 = por %p70, %p71
      %s73 = ssub.s32 %s26, %s40
      %s74 = ssub.s32 %s27, %s36
      %s75 = sor.u32 %s73, %s74
      %p76 = scmp.eq.s32.totalorder %s75, 0
      %s78 = sadd.s32 %s77, 1
      %s79 = scalar_select %p76, %s77, %s78
      %p82 = pneg %p76
      %p83 = scmp.eq.s32.totalorder %s18, 1
      %p84 = por %p82, %p83
      %p85 = scmp.ne.s32.totalorder %s77, %s80
      %p86 = scmp.eq.s32.totalorder %s18, 0
      %p87 = por %p85, %p86
      %p88 = scmp.ne.s32.totalorder %s77, %s80
      %p89 = scmp.eq.s32.totalorder %s23, 1
      %p90 = por %p88, %p89
      %p91 = scmp.ne.s32.totalorder %s80, %s81
      %p92 = scmp.eq.s32.totalorder %s23, 0
      %p93 = por %p91, %p92
      %p94 = scmp.ne.s32.totalorder %s80, %s81
      %p95 = scmp.eq.s32.totalorder %s24, 1
      %p96 = por %p94, %p95
      %p98 = scmp.ne.s32.totalorder %s81, %s97
      %p99 = scmp.eq.s32.totalorder %s24, 0
      %p100 = por %p98, %p99
      %s101 = ssub.s32 %s26, %s40
      %p102 = scmp.eq.s32.totalorder %s101, 0
      %s104 = sadd.s32 %s103, 1
      %s105 = scalar_select %p102, %s103, %s104
      %p108 = pneg %p102
      %p109 = scmp.eq.s32.totalorder %s18, 1
      %p110 = por %p108, %p109
      %p111 = scmp.ne.s32.totalorder %s103, %s106
      %p112 = scmp.eq.s32.totalorder %s18, 0
      %p113 = por %p111, %p112
      %p114 = scmp.ne.s32.totalorder %s103, %s106
      %p115 = scmp.eq.s32.totalorder %s23, 1
      %p116 = por %p114, %p115
      %p117 = scmp.ne.s32.totalorder %s106, %s107
      %p118 = scmp.eq.s32.totalorder %s23, 0
      %p119 = por %p117, %p118
      %p120 = scmp.ne.s32.totalorder %s106, %s107
      %p121 = scmp.eq.s32.totalorder %s24, 1
      %p122 = por %p120, %p121
      %p124 = scmp.ne.s32.totalorder %s107, %s123
      %p125 = scmp.eq.s32.totalorder %s24, 0
      %p126 = por %p124, %p125
      %s127 = ssub.s32 %s25, %s44
      %p128 = scmp.eq.s32.totalorder %s127, 0
      %s130 = sadd.s32 %s129, 1
      %s131 = scalar_select %p128, %s129, %s130
      %p134 = pneg %p128
      %p135 = scmp.eq.s32.totalorder %s18, 1
      %p136 = por %p134, %p135
      %p137 = scmp.ne.s32.totalorder %s129, %s132
      %p138 = scmp.eq.s32.totalorder %s18, 0
      %p139 = por %p137, %p138
      %p140 = scmp.ne.s32.totalorder %s129, %s132
      %p141 = scmp.eq.s32.totalorder %s23, 1
      %p142 = por %p140, %p141
      %p143 = scmp.ne.s32.totalorder %s132, %s133
      %p144 = scmp.eq.s32.totalorder %s23, 0
      %p145 = por %p143, %p144
      %p146 = scmp.ne.s32.totalorder %s132, %s133
      %p147 = scmp.eq.s32.totalorder %s24, 1
      %p148 = por %p146, %p147
      %p150 = scmp.ne.s32.totalorder %s133, %s149
      %p151 = scmp.eq.s32.totalorder %s24, 0
      %p152 = por %p150, %p151
      %s153 = ssub.s32 %s26, %s40
      %p154 = scmp.eq.s32.totalorder %s153, 0
      %s156 = sadd.s32 %s155, 1
      %s157 = scalar_select %p154, %s155, %s156
      %p160 = pneg %p154
      %p161 = scmp.eq.s32.totalorder %s18, 1
      %p162 = por %p160, %p161
      %p163 = scmp.ne.s32.totalorder %s155, %s158
      %p164 = scmp.eq.s32.totalorder %s18, 0
      %p165 = por %p163, %p164
      %p166 = scmp.ne.s32.totalorder %s155, %s158
      %p167 = scmp.eq.s32.totalorder %s23, 1
      %p168 = por %p166, %p167
      %p169 = scmp.ne.s32.totalorder %s158, %s159
      %p170 = scmp.eq.s32.totalorder %s23, 0
      %p171 = por %p169, %p170
      %p172 = scmp.ne.s32.totalorder %s158, %s159
      %p173 = scmp.eq.s32.totalorder %s24, 1
      %p174 = por %p172, %p173
      %p176 = scmp.ne.s32.totalorder %s159, %s175
      %p177 = scmp.eq.s32.totalorder %s24, 0
      %p178 = por %p176, %p177
      %s179 = ssub.s32 %s25, %s44
      %s180 = ssub.s32 %s26, %s40
      %s181 = sor.u32 %s179, %s180
      %p182 = scmp.eq.s32.totalorder %s181, 0
      %s184 = sadd.s32 %s183, 1
      %s185 = scalar_select %p182, %s183, %s184
      %p188 = pneg %p182
      %p189 = scmp.eq.s32.totalorder %s18, 1
      %p190 = por %p188, %p189
      %p191 = scmp.ne.s32.totalorder %s183, %s186
      %p192 = scmp.eq.s32.totalorder %s18, 0
      %p193 = por %p191, %p192
      %p194 = scmp.ne.s32.totalorder %s183, %s186
      %p195 = scmp.eq.s32.totalorder %s23, 1
      %p196 = por %p194, %p195
      %p197 = scmp.ne.s32.totalorder %s186, %s187
      %p198 = scmp.eq.s32.totalorder %s23, 0
      %p199 = por %p197, %p198
      %p200 = scmp.ne.s32.totalorder %s186, %s187
      %p201 = scmp.eq.s32.totalorder %s24, 1
      %p202 = por %p200, %p201
      %p204 = scmp.ne.s32.totalorder %s187, %s203
      %p205 = scmp.eq.s32.totalorder %s24, 0
      %p206 = por %p204, %p205
      %p207 = scmp.le.s32.totalorder 1, %s18
      %p208 = scmp.lt.s32.totalorder %s18, 3
      %p209 = pnand %p207, %p208
      %p210 = pneg %p209
      // Predicated region
      $region9: #{tpu_custom_call.1} parent=5 // pred_check
        _
      $region10: #{tpu_custom_call.1} parent=5 // pred_check_branch
        %212 = sbr.rel (%p209) target = $region12
      $region11: #{tpu_custom_call.1} parent=5 // pred_region
        %s213 = ssub.s32 %s18, 1
        // Predicated region
        $region13: #{tpu_custom_call.1} parent=11 // pred_check
          %p214 = pneg %p93
        $region14: #{tpu_custom_call.1} parent=11 // pred_check_branch
          %216 = sbr.rel (%p214) target = $region16
        $region15: #{tpu_custom_call.1} parent=11 // pred_region
          %s217 = smul.u32 16, %s29
          %s219 = ssub.s32 2048, 2048
          %220 = vsyncadd [#allocation7], %s219
          %s221 = sadd.s32 %s30, %s217
          %s222 = smul.addr %s221, 128
          %s223 = scalar_lea.hbm %s1, %s222
          %s224 = sshll.u32 [#allocation6], 4
          %s225 = int_to_ptr.vmem [resolvable:$true] %s224
          %230 = dma.hbm_to_vmem [thread:$0]  %s223, 2048, %s225, [#allocation7], 128, 128, 8
        $region16: #{tpu_custom_call.1} parent=11 // pred_fallthru
          _
        // Predicated region
        $region17: #{tpu_custom_call.1} parent=11 // pred_check
          %p231 = pneg %p119
        $region18: #{tpu_custom_call.1} parent=11 // pred_check_branch
          %233 = sbr.rel (%p231) target = $region20
        $region19: #{tpu_custom_call.1} parent=11 // pred_region
          %p234 = scmp.lt.s32.totalorder %s29, 0
          %s235 = scalar_select %p234, %s29, 0
          %s236 = scalar_lea.vmem %s2, %s235
        $region20: #{tpu_custom_call.1} parent=11 // pred_fallthru
          _
        // Predicated region
        $region21: #{tpu_custom_call.1} parent=11 // pred_check
          %p237 = pneg %p171
        $region22: #{tpu_custom_call.1} parent=11 // pred_check_branch
          %239 = sbr.rel (%p237) target = $region24
        $region23: #{tpu_custom_call.1} parent=11 // pred_region
          %s241 = ssub.s32 2048, 2048
          %242 = vsyncadd [#allocation7], %s241
          %s243 = smul.addr %s29, 128
          %s244 = scalar_lea.hbm %s4, %s243
          %s245 = sshll.u32 [#allocation9], 4
          %s246 = int_to_ptr.vmem [resolvable:$true] %s245
          %251 = dma.hbm_to_vmem [thread:$0]  %s244, 2048, %s246, [#allocation7], 128, 128, 8
        $region24: #{tpu_custom_call.1} parent=11 // pred_fallthru
          _
      $region12: #{tpu_custom_call.1} parent=5 // pred_fallthru
        _
      %p252 = scmp.lt.s32.totalorder %s18, 2
      // Predicated region
      $region25: #{tpu_custom_call.1} parent=5 // pred_check
        %p253 = pneg %p252
      $region26: #{tpu_custom_call.1} parent=5 // pred_check_branch
        %255 = sbr.rel (%p253) target = $region28
      $region27: #{tpu_custom_call.1} parent=5 // pred_region
        // Predicated region
        $region29: #{tpu_custom_call.1} parent=27 // pred_check
          %p256 = pneg %p59
        $region30: #{tpu_custom_call.1} parent=27 // pred_check_branch
          %258 = sbr.rel (%p256) target = $region32
        $region31: #{tpu_custom_call.1} parent=27 // pred_region
          %s259 = sand.u32 %s18, 1
          %s260 = scalar_lea.sflag [#allocation4], %s259
          %s261 = sand.u32 %s49, 1
          %s262 = smul.addr %s261, 8
          %s263 = scalar_lea.vmem [#allocation3], %s262
          %s265 = ssub.s32 128, 128
          %266 = vsyncadd %s260, %s265
          %s267 = sadd.s32 %s27, %s25
          %s268 = smul.addr %s267, 128
          %s269 = scalar_lea.hbm %s0, %s268
          %s271 = sshll.u32 %s263, 4
          %s272 = int_to_ptr.vmem [resolvable:$true] %s271
          %274 = dma.hbm_to_vmem [thread:$0]  %s269, 128, %s272, %s260
        $region32: #{tpu_custom_call.1} parent=27 // pred_fallthru
          _
        // Predicated region
        $region33: #{tpu_custom_call.1} parent=27 // pred_check
          %p275 = pneg %p139
        $region34: #{tpu_custom_call.1} parent=27 // pred_check_branch
          %277 = sbr.rel (%p275) target = $region36
        $region35: #{tpu_custom_call.1} parent=27 // pred_region
          %s278 = sand.u32 %s18, 1
          %s279 = scalar_lea.sflag [#allocation4], %s278
          %s280 = sand.u32 %s129, 1
          %s281 = smul.addr %s280, 8
          %s282 = scalar_lea.vmem [#allocation8], %s281
          %s284 = ssub.s32 128, 128
          %285 = vsyncadd %s279, %s284
          %s286 = smul.addr %s25, 128
          %s287 = scalar_lea.hbm %s3, %s286
          %s289 = sshll.u32 %s282, 4
          %s290 = int_to_ptr.vmem [resolvable:$true] %s289
          %292 = dma.hbm_to_vmem [thread:$0]  %s287, 128, %s290, %s279
        $region36: #{tpu_custom_call.1} parent=27 // pred_fallthru
          _
      $region28: #{tpu_custom_call.1} parent=5 // pred_fallthru
        _
      %p293 = scmp.le.s32.totalorder 1, %s18
      %p294 = scmp.lt.s32.totalorder %s18, 3
      %p295 = pnand %p293, %p294
      %p296 = pneg %p295
      // Predicated region
      $region37: #{tpu_custom_call.1} parent=5 // pred_check
        _
      $region38: #{tpu_custom_call.1} parent=5 // pred_check_branch
        %298 = sbr.rel (%p295) target = $region40
      $region39: #{tpu_custom_call.1} parent=5 // pred_region
        %s299 = ssub.s32 %s18, 1
        %s300 = sand.u32 %s23, 1
        %s301 = scalar_lea.sflag [#allocation4], %s300
        %s302 = sand.u32 %s52, 1
        %s303 = smul.addr %s302, 8
        %s304 = scalar_lea.vmem [#allocation3], %s303
        // Predicated region
        $region41: #{tpu_custom_call.1} parent=39 // pred_check
          %p305 = pneg %p65
        $region42: #{tpu_custom_call.1} parent=39 // pred_check_branch
          %307 = sbr.rel (%p305) target = $region44
        $region43: #{tpu_custom_call.1} parent=39 // pred_region
          %308 = dma.done %s301, 128
        $region44: #{tpu_custom_call.1} parent=39 // pred_fallthru
          _
        // Predicated region
        $region45: #{tpu_custom_call.1} parent=39 // pred_check
          %p309 = pneg %p93
        $region46: #{tpu_custom_call.1} parent=39 // pred_check_branch
          %311 = sbr.rel (%p309) target = $region48
        $region47: #{tpu_custom_call.1} parent=39 // pred_region
          %312 = dma.done [#allocation7], 2048
        $region48: #{tpu_custom_call.1} parent=39 // pred_fallthru
          _
        %s313 = sand.u32 %s23, 1
        %s314 = scalar_lea.sflag [#allocation4], %s313
        %s315 = sand.u32 %s132, 1
        %s316 = smul.addr %s315, 8
        %s317 = scalar_lea.vmem [#allocation8], %s316
        // Predicated region
        $region49: #{tpu_custom_call.1} parent=39 // pred_check
          %p318 = pneg %p145
        $region50: #{tpu_custom_call.1} parent=39 // pred_check_branch
          %320 = sbr.rel (%p318) target = $region52
        $region51: #{tpu_custom_call.1} parent=39 // pred_region
          %321 = dma.done %s314, 128
        $region52: #{tpu_custom_call.1} parent=39 // pred_fallthru
          _
        // Predicated region
        $region53: #{tpu_custom_call.1} parent=39 // pred_check
          %p322 = pneg %p171
        $region54: #{tpu_custom_call.1} parent=39 // pred_check_branch
          %324 = sbr.rel (%p322) target = $region56
        $region55: #{tpu_custom_call.1} parent=39 // pred_region
          %325 = dma.done [#allocation7], 2048
        $region56: #{tpu_custom_call.1} parent=39 // pred_fallthru
          _
        %s326 = sand.u32 %s23, 1
        %s327 = scalar_lea.sflag [#allocation4], %s326
        %s328 = sand.u32 %s52, 1
        %s329 = smul.addr %s328, 8
        %s330 = scalar_lea.vmem [#allocation3], %s329
        %p331 = pneg %p65
        %p332 = pneg %p62
        %p333 = pneg %p93
        %p334 = pneg %p90
        %p335 = scmp.lt.s32.totalorder %s29, 0
        %s336 = scalar_select %p335, %s29, 0
        %s337 = scalar_lea.vmem %s2, %s336
        %p338 = pneg %p119
        %p339 = pneg %p116
        %s340 = sand.u32 %s23, 1
        %s341 = scalar_lea.sflag [#allocation4], %s340
        %s342 = sand.u32 %s132, 1
        %s343 = smul.addr %s342, 8
        %s344 = scalar_lea.vmem [#allocation8], %s343
        %p345 = pneg %p145
        %p346 = pneg %p142
        %p347 = pneg %p171
        %p348 = pneg %p168
        %p349 = pneg %p199
        %p350 = pneg %p196
        %s351 = sand.u32 %s186, 1
        %s352 = scalar_lea.sflag [#allocation5], %s351
        %s353 = sand.u32 %s186, 1
        %s354 = smul.addr %s353, 8
        %s355 = scalar_lea.vmem [#allocation10], %s354
        %s356 = smul.u32 16, %s29
        %p357 = scmp.lt.s32.totalorder %s29, 0
        %s358 = scalar_select %p357, %s29, 0
        %s359 = scalar_lea.vmem %s2, %s358
        %v360 = vld [vmem:[%s304] sm:$0xff]
        %v361 = vld [vmem:[#allocation6] sm:$0xff]
        %v362 = vld [vmem:[#allocation6 + $0x8] sm:$0xff]
        %v363 = vld [vmem:[#allocation6 + $0x10] sm:$0xff]
        %v364 = vld [vmem:[#allocation6 + $0x18] sm:$0xff]
        %v365 = vld [vmem:[#allocation6 + $0x20] sm:$0xff]
        %v366 = vld [vmem:[#allocation6 + $0x28] sm:$0xff]
        %v367 = vld [vmem:[#allocation6 + $0x30] sm:$0xff]
        %v368 = vld [vmem:[#allocation6 + $0x38] sm:$0xff]
        %v369 = vld [vmem:[#allocation6 + $0x40] sm:$0xff]
        %v370 = vld [vmem:[#allocation6 + $0x48] sm:$0xff]
        %v371 = vld [vmem:[#allocation6 + $0x50] sm:$0xff]
        %v372 = vld [vmem:[#allocation6 + $0x58] sm:$0xff]
        %v373 = vld [vmem:[#allocation6 + $0x60] sm:$0xff]
        %v374 = vld [vmem:[#allocation6 + $0x68] sm:$0xff]
        %v375 = vld [vmem:[#allocation6 + $0x70] sm:$0xff]
        %v376 = vld [vmem:[#allocation6 + $0x78] sm:$0xff]
        %377 = vmatprep.subr.mxu0 0.0
        %378 = vmatpush1.xpose.msra.mxu0 %v361
        %379 = vmatprep.subr.mxu0 0.0
        %380 = vmatpush1.xpose.msra.mxu0 %v362
        %381 = vmatprep.subr.mxu0 0.0
        %382 = vmatpush1.xpose.msra.mxu0 %v363
        %383 = vmatprep.subr.mxu0 0.0
        %384 = vmatpush1.xpose.msra.mxu0 %v364
        %385 = vmatprep.subr.mxu0 0.0
        %386 = vmatpush1.xpose.msra.mxu0 %v365
        %387 = vmatprep.subr.mxu0 0.0
        %388 = vmatpush1.xpose.msra.mxu0 %v366
        %389 = vmatprep.subr.mxu0 0.0
        %390 = vmatpush1.xpose.msra.mxu0 %v367
        %391 = vmatprep.subr.mxu0 0.0
        %392 = vmatpush1.xpose.msra.mxu0 %v368
        %393 = vmatprep.subr.mxu0 0.0
        %394 = vmatpush1.xpose.msra.mxu0 %v369
        %395 = vmatprep.subr.mxu0 0.0
        %396 = vmatpush1.xpose.msra.mxu0 %v370
        %397 = vmatprep.subr.mxu0 0.0
        %398 = vmatpush1.xpose.msra.mxu0 %v371
        %399 = vmatprep.subr.mxu0 0.0
        %400 = vmatpush1.xpose.msra.mxu0 %v372
        %401 = vmatprep.subr.mxu0 0.0
        %402 = vmatpush1.xpose.msra.mxu0 %v373
        %403 = vmatprep.subr.mxu0 0.0
        %404 = vmatpush1.xpose.msra.mxu0 %v374
        %405 = vmatprep.subr.mxu0 0.0
        %406 = vmatpush1.xpose.msra.mxu0 %v375
        %407 = vmatprep.subr.mxu0 0.0
        %408 = vmatpush1.xpose.msra.mxu0 %v376
        %409 = vmatprep.subr.mxu0 0.0
        %410 = vmatpush1.xpose.msra.mxu0 0.0
        %411 = vmatprep.subr.mxu0 0.0
        %412 = vmatpush1.xpose.msra.mxu0 0.0
        %413 = vmatprep.subr.mxu0 0.0
        %414 = vmatpush1.xpose.msra.mxu0 0.0
        %415 = vmatprep.subr.mxu0 0.0
        %416 = vmatpush1.xpose.msra.mxu0 0.0
        %417 = vmatprep.subr.mxu0 0.0
        %418 = vmatpush1.xpose.msra.mxu0 0.0
        %419 = vmatprep.subr.mxu0 0.0
        %420 = vmatpush1.xpose.msra.mxu0 0.0
        %421 = vmatprep.subr.mxu0 0.0
        %422 = vmatpush1.xpose.msra.mxu0 0.0
        %423 = vmatprep.subr.mxu0 0.0
        %424 = vmatpush1.xpose.msra.mxu0 0.0
        %425 = vmatprep.subr.mxu0 0.0
        %426 = vmatpush1.xpose.msra.mxu0 0.0
        %427 = vmatprep.subr.mxu0 0.0
        %428 = vmatpush1.xpose.msra.mxu0 0.0
        %429 = vmatprep.subr.mxu0 0.0
        %430 = vmatpush1.xpose.msra.mxu0 0.0
        %431 = vmatprep.subr.mxu0 0.0
        %432 = vmatpush1.xpose.msra.mxu0 0.0
        %433 = vmatprep.subr.mxu0 0.0
        %434 = vmatpush1.xpose.msra.mxu0 0.0
        %435 = vmatprep.subr.mxu0 0.0
        %436 = vmatpush1.xpose.msra.mxu0 0.0
        %437 = vmatprep.subr.mxu0 0.0
        %438 = vmatpush1.xpose.msra.mxu0 0.0
        %439 = vmatprep.subr.mxu0 0.0
        %440 = vmatpush1.xpose.msra.mxu0 0.0
        %441 = vmatprep.mubr.f32.mxu0 0.0
        %442 = vmatmul.mubr.f32.gmra.mrb[0].mxu0 %v360
        %v443 = vpop.f32.mrb[0].mxu0
        %v444 = vadd.f32 0.0, %v443
        %v445 = vpop.f32.mrb[0].mxu0
        %446 = vdwg.mxu0
        %p447 = scmp.eq.s32.totalorder %s30, 0
        // Predicated region
        $region57: #{tpu_custom_call.1} parent=39 // pred_check
          %p448 = pneg %p447
        $region58: #{tpu_custom_call.1} parent=39 // pred_check_branch
          %450 = sbr.rel (%p448) target = $region60
        $region59: #{tpu_custom_call.1} parent=39 // pred_region
          %451 = vst [vmem:[#allocation2] sm:$0xff] %v444
        $region60: #{tpu_custom_call.1} parent=39 // pred_fallthru
          _
        %p452 = scmp.gt.s32.totalorder %s30, 0
        // Predicated region
        $region61: #{tpu_custom_call.1} parent=39 // pred_check
          %p453 = pneg %p452
        $region62: #{tpu_custom_call.1} parent=39 // pred_check_branch
          %455 = sbr.rel (%p453) target = $region64
        $region63: #{tpu_custom_call.1} parent=39 // pred_region
          %v456 = vld [vmem:[#allocation2] sm:$0xff]
          %v457 = vadd.f32 %v456, %v444
          %458 = vst [vmem:[#allocation2] sm:$0xff] %v457
        $region64: #{tpu_custom_call.1} parent=39 // pred_fallthru
          _
        // Predicated region
        $region65: #{tpu_custom_call.1} parent=39 // pred_check
          %p459 = pneg %p447
        $region66: #{tpu_custom_call.1} parent=39 // pred_check_branch
          %461 = sbr.rel (%p459) target = $region68
        $region67: #{tpu_custom_call.1} parent=39 // pred_region
          %v462 = vld [vmem:[%s317] sm:$0xff]
          %v463 = vld [vmem:[#allocation9] sm:$0xff]
          %v464 = vld [vmem:[#allocation9 + $0x8] sm:$0xff]
          %v465 = vld [vmem:[#allocation9 + $0x10] sm:$0xff]
          %v466 = vld [vmem:[#allocation9 + $0x18] sm:$0xff]
          %v467 = vld [vmem:[#allocation9 + $0x20] sm:$0xff]
          %v468 = vld [vmem:[#allocation9 + $0x28] sm:$0xff]
          %v469 = vld [vmem:[#allocation9 + $0x30] sm:$0xff]
          %v470 = vld [vmem:[#allocation9 + $0x38] sm:$0xff]
          %v471 = vld [vmem:[#allocation9 + $0x40] sm:$0xff]
          %v472 = vld [vmem:[#allocation9 + $0x48] sm:$0xff]
          %v473 = vld [vmem:[#allocation9 + $0x50] sm:$0xff]
          %v474 = vld [vmem:[#allocation9 + $0x58] sm:$0xff]
          %v475 = vld [vmem:[#allocation9 + $0x60] sm:$0xff]
          %v476 = vld [vmem:[#allocation9 + $0x68] sm:$0xff]
          %v477 = vld [vmem:[#allocation9 + $0x70] sm:$0xff]
          %v478 = vld [vmem:[#allocation9 + $0x78] sm:$0xff]
          %479 = vmatprep.subr.mxu0 0.0
          %480 = vmatpush1.msra.mxu0 %v463
          %481 = vmatprep.subr.mxu0 0.0
          %482 = vmatpush1.msra.mxu0 %v464
          %483 = vmatprep.subr.mxu0 0.0
          %484 = vmatpush1.msra.mxu0 %v465
          %485 = vmatprep.subr.mxu0 0.0
          %486 = vmatpush1.msra.mxu0 %v466
          %487 = vmatprep.subr.mxu0 0.0
          %488 = vmatpush1.msra.mxu0 %v467
          %489 = vmatprep.subr.mxu0 0.0
          %490 = vmatpush1.msra.mxu0 %v468
          %491 = vmatprep.subr.mxu0 0.0
          %492 = vmatpush1.msra.mxu0 %v469
          %493 = vmatprep.subr.mxu0 0.0
          %494 = vmatpush1.msra.mxu0 %v470
          %495 = vmatprep.subr.mxu0 0.0
          %496 = vmatpush1.msra.mxu0 %v471
          %497 = vmatprep.subr.mxu0 0.0
          %498 = vmatpush1.msra.mxu0 %v472
          %499 = vmatprep.subr.mxu0 0.0
          %500 = vmatpush1.msra.mxu0 %v473
          %501 = vmatprep.subr.mxu0 0.0
          %502 = vmatpush1.msra.mxu0 %v474
          %503 = vmatprep.subr.mxu0 0.0
          %504 = vmatpush1.msra.mxu0 %v475
          %505 = vmatprep.subr.mxu0 0.0
          %506 = vmatpush1.msra.mxu0 %v476
          %507 = vmatprep.subr.mxu0 0.0
          %508 = vmatpush1.msra.mxu0 %v477
          %509 = vmatprep.subr.mxu0 0.0
          %510 = vmatpush1.msra.mxu0 %v478
          %511 = vmatprep.subr.mxu0 0.0
          %512 = vmatpush1.msra.mxu0 0.0
          %513 = vmatprep.subr.mxu0 0.0
          %514 = vmatpush1.msra.mxu0 0.0
          %515 = vmatprep.subr.mxu0 0.0
          %516 = vmatpush1.msra.mxu0 0.0
          %517 = vmatprep.subr.mxu0 0.0
          %518 = vmatpush1.msra.mxu0 0.0
          %519 = vmatprep.subr.mxu0 0.0
          %520 = vmatpush1.msra.mxu0 0.0
          %521 = vmatprep.subr.mxu0 0.0
          %522 = vmatpush1.msra.mxu0 0.0
          %523 = vmatprep.subr.mxu0 0.0
          %524 = vmatpush1.msra.mxu0 0.0
          %525 = vmatprep.subr.mxu0 0.0
          %526 = vmatpush1.msra.mxu0 0.0
          %527 = vmatprep.subr.mxu0 0.0
          %528 = vmatpush1.msra.mxu0 0.0
          %529 = vmatprep.subr.mxu0 0.0
          %530 = vmatpush1.msra.mxu0 0.0
          %531 = vmatprep.subr.mxu0 0.0
          %532 = vmatpush1.msra.mxu0 0.0
          %533 = vmatprep.subr.mxu0 0.0
          %534 = vmatpush1.msra.mxu0 0.0
          %535 = vmatprep.subr.mxu0 0.0
          %536 = vmatpush1.msra.mxu0 0.0
          %537 = vmatprep.subr.mxu0 0.0
          %538 = vmatpush1.msra.mxu0 0.0
          %539 = vmatprep.subr.mxu0 0.0
          %540 = vmatpush1.msra.mxu0 0.0
          %541 = vmatprep.subr.mxu0 0.0
          %542 = vmatpush1.msra.mxu0 0.0
          %543 = vmatprep.mubr.f32.mxu0 0.0
          %544 = vmatmul.mubr.f32.gmra.mrb[0].mxu0 %v462
          %v545 = vpop.f32.mrb[0].mxu0
          %v546 = vadd.f32 0.0, %v545
          %v547 = vpop.f32.mrb[0].mxu0
          %548 = vdwg.mxu0
          %v549 = vld [vmem:[#allocation2] sm:$0xff]
          %v550 = vld [vmem:[%s359] sm:$0x1]
          %v552 = vlaneseq
          %v553 = vshrl.u32 %v552, 7
          %v554 = vsub.s32 0, %v553
          %v555 = vrot.slane %v550, %v554
          %v557 = vadd.f32 %v549, %v555
          %v558 = vadd.f32 %v557, %v546
          %559 = vst [vmem:[%s355] sm:$0xff] %v558
        $region68: #{tpu_custom_call.1} parent=39 // pred_fallthru
          _
        %s560 = sand.u32 %s186, 1
        %s561 = scalar_lea.sflag [#allocation5], %s560
        %s562 = sand.u32 %s186, 1
        %s563 = smul.addr %s562, 8
        %s564 = scalar_lea.vmem [#allocation10], %s563
        // Predicated region
        $region69: #{tpu_custom_call.1} parent=39 // pred_check
          %p565 = pneg %p196
        $region70: #{tpu_custom_call.1} parent=39 // pred_check_branch
          %567 = sbr.rel (%p565) target = $region72
        $region71: #{tpu_custom_call.1} parent=39 // pred_region
          %s569 = ssub.s32 128, 128
          %570 = vsyncadd %s561, %s569
          %s571 = sadd.s32 %s29, %s28
          %s572 = smul.addr %s571, 128
          %s573 = scalar_lea.hbm %s5, %s572
          %s575 = sshll.u32 %s564, 4
          %s576 = int_to_ptr.vmem [resolvable:$true] %s575
          %578 = dma.vmem_to_hbm [thread:$0]  %s576, 128, %s573, %s561
        $region72: #{tpu_custom_call.1} parent=39 // pred_fallthru
          _
      $region40: #{tpu_custom_call.1} parent=5 // pred_fallthru
        _
      %p579 = scmp.le.s32.totalorder 2, %s18
      // Predicated region
      $region73: #{tpu_custom_call.1} parent=5 // pred_check
        %p580 = pneg %p579
      $region74: #{tpu_custom_call.1} parent=5 // pred_check_branch
        %582 = sbr.rel (%p580) target = $region76
      $region75: #{tpu_custom_call.1} parent=5 // pred_region
        %s583 = ssub.s32 %s18, 2
        // Predicated region
        $region77: #{tpu_custom_call.1} parent=75 // pred_check
          %p584 = pneg %p202
        $region78: #{tpu_custom_call.1} parent=75 // pred_check_branch
          %586 = sbr.rel (%p584) target = $region80
        $region79: #{tpu_custom_call.1} parent=75 // pred_region
          %s587 = sand.u32 %s187, 1
          %s588 = scalar_lea.sflag [#allocation5], %s587
          %s589 = sand.u32 %s187, 1
          %s590 = smul.addr %s589, 8
          %s591 = scalar_lea.vmem [#allocation10], %s590
          %592 = dma.done %s588, 128
        $region80: #{tpu_custom_call.1} parent=75 // pred_fallthru
          _
      $region76: #{tpu_custom_call.1} parent=5 // pred_fallthru
        _
    $region6: #{tpu_custom_call.1} parent=1 // loop_footer
      %s22 = sadd.s32 1, %s18
    $region7: #{tpu_custom_call.1} parent=1 // loop_footer_branch
      %17 = sbr.rel target = $region3
    $region8: #{tpu_custom_call.1} parent=1 // loop_exit
      _
    %593 = vsyncpa [#allocation4], 1
    %s594 = scalar_lea.sflag [#allocation4], 1
    %595 = vsyncpa %s594, 1
    %596 = vsyncpa [#allocation7], 1
    %597 = vsyncpa [#allocation5], 1
    %s598 = scalar_lea.sflag [#allocation5], 1
    %599 = vsyncpa %s598, 1

</llo_original>
